<compile_context>
chip_gen: v5e
topology: v5e:2x2
jax: 0.10.0
libtpu: 0.0.40
codegen_flags: <defaults>
</compile_context>

<pallas_src>
import jax
import jax.numpy as jnp
from jax.experimental import pallas as pl
from jax.experimental.pallas import tpu as pltpu


def _recon_heads_kernel(x_ref, wcat_ref, bcat_ref, wcon_ref, bcon_ref,
                        cat_ref, con_ref):
    """Fused reconstruction heads for one batch tile.

    x_ref    : (TB, S*D)        flattened tokens of TB batches
    wcat_ref : (S*D, num_cat*U) block-diagonal cat-classifier weight
    bcat_ref : (1, num_cat*U)   tiled cat bias (f32)
    wcon_ref : (S*D, num_con)   block-diagonal con-regressor weight
    bcon_ref : (1, num_con)     tiled con bias (f32)
    cat_ref  : (TB, num_cat*U)  cat logits (final layout)
    con_ref  : (TB, num_con)    con predictions (final layout)
    """
    x = x_ref[...]
    cat = jnp.dot(x, wcat_ref[...], preferred_element_type=jnp.float32)
    con = jnp.dot(x, wcon_ref[...], preferred_element_type=jnp.float32)
    cat_ref[...] = (cat + bcat_ref[...]).astype(cat_ref.dtype)
    con_ref[...] = (con + bcon_ref[...]).astype(con_ref.dtype)


def transformer_embedding_r_forward(x, w_cat, b_cat, w_con, b_con,
                                    num_cat, num_con, *, block_batches=2048):
    """x: (B, 1 + num_cat + num_con, D). Returns (cat_x, con_x)."""
    B, s_tot, D = x.shape
    assert s_tot == 1 + num_cat + num_con
    U = w_cat.shape[0]                       # num_unique_cat
    K = s_tot * D
    n_cat = num_cat * U
    n_con = num_con
    wdtype = x.dtype

    # ---- wrapper-side fused weight prep (tiny, one-time) ----
    # Token t (t = 0..num_cat-1 after the dropped leading token) uses input
    # columns (1+t)*D:(2+t)*D and output columns t*U:(t+1)*U  -> block-diagonal.
    w_cat_big = jnp.kron(jnp.eye(num_cat, dtype=jnp.float32),
                         w_cat.astype(jnp.float32).T)           # (num_cat*D, n_cat)
    w_cat_big = jnp.pad(w_cat_big, ((D, num_con * D), (0, 0))).astype(wdtype)  # (K, n_cat)
    w_con_big = jnp.kron(jnp.eye(num_con, dtype=jnp.float32),
                         w_con.astype(jnp.float32).T)           # (num_con*D, n_con)
    w_con_big = jnp.pad(w_con_big, (((1 + num_cat) * D, 0), (0, 0))).astype(wdtype)  # (K, n_con)
    b_cat_big = jnp.tile(b_cat.astype(jnp.float32), num_cat).reshape(1, n_cat)
    b_con_big = jnp.tile(b_con.astype(jnp.float32), num_con).reshape(1, n_con)

    # Metadata-only reshape (contiguous, no dtype cast, no HBM copy).
    x2 = x.reshape(B, K)

    # Batch tiling.
    if B <= 64:
        tb = B                               # single full block (launch-bound regime)
    else:
        half = -(-B // 2)                    # ceil(B/2): guarantee >= 2 grid steps (v7x)
        half = -(-half // 8) * 8             # multiple of 8 (sublane alignment)
        tb = min(block_batches, half)
    grid = (pl.cdiv(B, tb),)

    itemsize = jnp.dtype(x.dtype).itemsize
    cost = pl.CostEstimate(
        flops=int(2 * B * K * (n_cat + n_con)),
        transcendentals=0,
        bytes_accessed=int(B * K * itemsize                     # x read
                           + B * (n_cat + n_con) * itemsize     # outputs written
                           + K * (n_cat + n_con) * itemsize     # fused weights
                           + (n_cat + n_con) * 4),              # biases
    )

    cat_out, con_out = pl.pallas_call(
        _recon_heads_kernel,
        out_shape=(jax.ShapeDtypeStruct((B, n_cat), x.dtype),
                   jax.ShapeDtypeStruct((B, n_con), x.dtype)),
        grid=grid,
        in_specs=[
            pl.BlockSpec((tb, K), lambda i: (i, 0)),
            pl.BlockSpec((K, n_cat), lambda i: (0, 0)),   # grid-invariant: fetched once
            pl.BlockSpec((1, n_cat), lambda i: (0, 0)),
            pl.BlockSpec((K, n_con), lambda i: (0, 0)),
            pl.BlockSpec((1, n_con), lambda i: (0, 0)),
        ],
        out_specs=[
            pl.BlockSpec((tb, n_cat), lambda i: (i, 0)),
            pl.BlockSpec((tb, n_con), lambda i: (i, 0)),
        ],
        compiler_params=pltpu.CompilerParams(
            dimension_semantics=("parallel",),
            vmem_limit_bytes=32 * 1024 * 1024,
        ),
        cost_estimate=cost,
    )(x2, w_cat_big, b_cat_big, w_con_big, b_con_big)

    # Metadata-only reshapes back to the PyTorch output layouts (contiguous).
    cat_x = cat_out.reshape(B, num_cat, U)
    con_x = con_out.reshape(B, num_con, 1)
    return cat_x, con_x


if __name__ == "__main__":
    # Config consistent with the module's __init__:
    #   field_lengths_tabular = [3, 5, 4, 6, 1, 1, 1, 1]
    #   -> cat lengths [3,5,4,6]: num_cat=4, num_unique_cat=18
    #   -> con lengths [1,1,1,1]: num_con=4
    #   tabular_embedding_dim D = 32
    cat_lengths = [3, 5, 4, 6]
    num_cat = len(cat_lengths)
    num_unique_cat = sum(cat_lengths)        # 18
    num_con = 4
    D = 32
    B = 2
    S_in = 1 + num_cat + num_con

    key = jax.random.PRNGKey(0)
    k_x, k_wcat, k_wcon, k_bcat, k_bcon, k_xbig = jax.random.split(key, 6)

    x = jax.random.normal(k_x, (B, S_in, D), dtype=jnp.float32)

    # nn.Linear params ('normal' init: weights N(0, 0.001); nonzero biases here
    # purely to exercise the bias path in the correctness check).
    w_cat = 0.001 * jax.random.normal(k_wcat, (num_unique_cat, D), dtype=jnp.float32)
    b_cat = 0.01 * jax.random.normal(k_bcat, (num_unique_cat,), dtype=jnp.float32)
    w_con = 0.001 * jax.random.normal(k_wcon, (1, D), dtype=jnp.float32)
    b_con = 0.01 * jax.random.normal(k_bcon, (1,), dtype=jnp.float32)

    def reference(xin):
        xt = xin[:, 1:, :]
        cat_r = jnp.einsum('bsd,ud->bsu', xt[:, :num_cat], w_cat) + b_cat
        con_r = jnp.einsum('bsd,ud->bsu', xt[:, num_cat:], w_con) + b_con
        return cat_r, con_r

    # Small-batch path (single block).
    cat_x, con_x = transformer_embedding_r_forward(
        x, w_cat, b_cat, w_con, b_con, num_cat, num_con)
    jax.block_until_ready((cat_x, con_x))
    cat_r, con_r = reference(x)
    assert cat_x.shape == (B, num_cat, num_unique_cat)
    assert con_x.shape == (B, num_con, 1)
    assert jnp.allclose(cat_x, cat_r, atol=3e-5)
    assert jnp.allclose(con_x, con_r, atol=3e-5)

    # Larger-batch path: 2 parallel grid steps + ragged last block.
    B2 = 200
    x_big = jax.random.normal(k_xbig, (B2, S_in, D), dtype=jnp.float32)
    cat2, con2 = transformer_embedding_r_forward(
        x_big, w_cat, b_cat, w_con, b_con, num_cat, num_con)
    jax.block_until_ready((cat2, con2))
    cat2_r, con2_r = reference(x_big)
    assert jnp.allclose(cat2, cat2_r, atol=3e-5)
    assert jnp.allclose(con2, con2_r, atol=3e-5)

    print("KERNEL_OK")
</pallas_src>

<mosaic_0001>
module attributes {stable_mosaic.version = 11 : i64} {
  func.func @_recon_heads_kernel(%arg0: i32, %arg1: memref<2x288xf32, #tpu.memory_space<vmem>>, %arg2: memref<288x72xf32, #tpu.memory_space<vmem>>, %arg3: memref<1x72xf32, #tpu.memory_space<vmem>>, %arg4: memref<288x4xf32, #tpu.memory_space<vmem>>, %arg5: memref<1x4xf32, #tpu.memory_space<vmem>>, %arg6: memref<2x72xf32, #tpu.memory_space<vmem>>, %arg7: memref<2x4xf32, #tpu.memory_space<vmem>>) attributes {dimension_semantics = [#tpu.dimension_semantics<parallel>], iteration_bounds = array<i64: 1>, scalar_prefetch = 0 : i64, scratch_operands = 0 : i64, tpu.core_type = #tpu.core_type<tc>, window_params = [{transform_indices = @transform_0, window_bounds = array<i64: 2, 288>}, {pipeline_mode = #tpu.pipeline_mode<synchronous>, transform_indices = @transform_1, window_bounds = array<i64: 288, 72>}, {pipeline_mode = #tpu.pipeline_mode<synchronous>, transform_indices = @transform_2, window_bounds = array<i64: 1, 72>}, {pipeline_mode = #tpu.pipeline_mode<synchronous>, transform_indices = @transform_3, window_bounds = array<i64: 288, 4>}, {pipeline_mode = #tpu.pipeline_mode<synchronous>, transform_indices = @transform_4, window_bounds = array<i64: 1, 4>}, {transform_indices = @transform_5, window_bounds = array<i64: 2, 72>}, {transform_indices = @transform_6, window_bounds = array<i64: 2, 4>}]} {
    %c0 = arith.constant 0 : index
    %c0_0 = arith.constant 0 : index
    %0 = vector.load %arg1[%c0, %c0_0] : memref<2x288xf32, #tpu.memory_space<vmem>>, vector<2x288xf32>
    %c0_1 = arith.constant 0 : index
    %c0_2 = arith.constant 0 : index
    %1 = vector.load %arg2[%c0_1, %c0_2] : memref<288x72xf32, #tpu.memory_space<vmem>>, vector<288x72xf32>
    %cst = arith.constant dense<0.000000e+00> : vector<2x72xf32>
    %2 = tpu.matmul %0, %1, %cst {dimension_numbers = #tpu.dot_dimension_numbers<[1], [0], [0], [1], [0, 0, 1, 1], [], []>} : vector<2x288xf32>, vector<288x72xf32>, vector<2x72xf32> -> vector<2x72xf32>
    %c0_3 = arith.constant 0 : index
    %c0_4 = arith.constant 0 : index
    %3 = vector.load %arg4[%c0_3, %c0_4] : memref<288x4xf32, #tpu.memory_space<vmem>>, vector<288x4xf32>
    %cst_5 = arith.constant dense<0.000000e+00> : vector<2x4xf32>
    %4 = tpu.matmul %0, %3, %cst_5 {dimension_numbers = #tpu.dot_dimension_numbers<[1], [0], [0], [1], [0, 0, 1, 1], [], []>} : vector<2x288xf32>, vector<288x4xf32>, vector<2x4xf32> -> vector<2x4xf32>
    %c0_6 = arith.constant 0 : index
    %c0_7 = arith.constant 0 : index
    %5 = vector.load %arg3[%c0_6, %c0_7] : memref<1x72xf32, #tpu.memory_space<vmem>>, vector<1x72xf32>
    %6 = vector.broadcast %5 : vector<1x72xf32> to vector<2x72xf32>
    %7 = arith.addf %2, %6 : vector<2x72xf32>
    %c0_8 = arith.constant 0 : index
    %c0_9 = arith.constant 0 : index
    %8 = vector.load %arg6[%c0_8, %c0_9] : memref<2x72xf32, #tpu.memory_space<vmem>>, vector<2x72xf32>
    tpu.vector_store %arg6[%c0_8, %c0_9], %7 {strides = array<i32>} : memref<2x72xf32, #tpu.memory_space<vmem>>, vector<2x72xf32>,
    %c0_10 = arith.constant 0 : index
    %c0_11 = arith.constant 0 : index
    %9 = vector.load %arg5[%c0_10, %c0_11] : memref<1x4xf32, #tpu.memory_space<vmem>>, vector<1x4xf32>
    %10 = vector.broadcast %9 : vector<1x4xf32> to vector<2x4xf32>
    %11 = arith.addf %4, %10 : vector<2x4xf32>
    %c0_12 = arith.constant 0 : index
    %c0_13 = arith.constant 0 : index
    %12 = vector.load %arg7[%c0_12, %c0_13] : memref<2x4xf32, #tpu.memory_space<vmem>>, vector<2x4xf32>
    tpu.vector_store %arg7[%c0_12, %c0_13], %11 {strides = array<i32>} : memref<2x4xf32, #tpu.memory_space<vmem>>, vector<2x4xf32>,
    return
  }
  func.func @transform_0(%arg0: i32) -> (i32, i32) {
    %c0_i32 = arith.constant 0 : i32
    %c0_i32_0 = arith.constant 0 : i32
    return %arg0, %c0_i32 : i32, i32
  }
  func.func @transform_1(%arg0: i32) -> (i32, i32) {
    %c0_i32 = arith.constant 0 : i32
    %c0_i32_0 = arith.constant 0 : i32
    %c0_i32_1 = arith.constant 0 : i32
    return %c0_i32, %c0_i32_0 : i32, i32
  }
  func.func @transform_2(%arg0: i32) -> (i32, i32) {
    %c0_i32 = arith.constant 0 : i32
    %c0_i32_0 = arith.constant 0 : i32
    %c0_i32_1 = arith.constant 0 : i32
    return %c0_i32, %c0_i32_0 : i32, i32
  }
  func.func @transform_3(%arg0: i32) -> (i32, i32) {
    %c0_i32 = arith.constant 0 : i32
    %c0_i32_0 = arith.constant 0 : i32
    %c0_i32_1 = arith.constant 0 : i32
    return %c0_i32, %c0_i32_0 : i32, i32
  }
  func.func @transform_4(%arg0: i32) -> (i32, i32) {
    %c0_i32 = arith.constant 0 : i32
    %c0_i32_0 = arith.constant 0 : i32
    %c0_i32_1 = arith.constant 0 : i32
    return %c0_i32, %c0_i32_0 : i32, i32
  }
  func.func @transform_5(%arg0: i32) -> (i32, i32) {
    %c0_i32 = arith.constant 0 : i32
    %c0_i32_0 = arith.constant 0 : i32
    return %arg0, %c0_i32 : i32, i32
  }
  func.func @transform_6(%arg0: i32) -> (i32, i32) {
    %c0_i32 = arith.constant 0 : i32
    %c0_i32_0 = arith.constant 0 : i32
    return %arg0, %c0_i32 : i32, i32
  }
}

</mosaic_0001>

<llo_original>
// kernel: tpu_custom_call.1
$region0: #{tpu_custom_call.1}
  #allocation0 [shape = 'u32[]', space=smem, size = 0x4, offset = 0x4, fixed_abs, tag = 'smem constant byte address 0x4 - core index']
  #allocation1 [shape = 'u32[72,128]{1,0:T(1,128)}', space=vmem, size = 0x9000, scoped, tag = 'internal scratch']
  %s0 = inlined_call_operand.vmem [shape: f32[2,288], index: 0, kind: input, shape index: {}]
  %s1 = inlined_call_operand.vmem [shape: f32[288,72], index: 1, kind: input, shape index: {}]
  %s2 = inlined_call_operand.vmem [shape: f32[1,72], index: 2, kind: input, shape index: {}]
  %s3 = inlined_call_operand.vmem [shape: f32[288,4], index: 3, kind: input, shape index: {}]
  %s4 = inlined_call_operand.vmem [shape: f32[1,4], index: 4, kind: input, shape index: {}]
  %s5 = inlined_call_operand.hbm [shape: f32[2,72], index: 5, kind: output, shape index: {0}]
  %s6 = inlined_call_operand.hbm [shape: f32[2,4], index: 6, kind: output, shape index: {1}]
  %7 = xla_tuple %s5, %s6
  %s8 = sld [smem:[#allocation0]]
  $region38: #{tpu_custom_call.1} parent=0
    _
  %s10 = ssub.s32 1, %s8
  %s11 = scalar_select 0, %s10, %s8
  $region1: #{tpu_custom_call.1} parent=0
    #allocation2 [shape = 'u8[1024]{0}', space=vmem, size = 0x400, scoped, tag = 'output window, operand 0, single buffered']
    #allocation3 [shape = 's32[1]{0}', space=sflag, size = 0x4, scoped, tag = 'scoped memory for tpu_custom_call.1']
    #allocation4 [shape = 'u8[1024]{0}', space=vmem, size = 0x400, scoped, tag = 'output window, operand 1, single buffered']
    #allocation5 [shape = 's32[1]{0}', space=sflag, size = 0x4, scoped, tag = 'scoped memory for tpu_custom_call.1']
    %12 = vsyncpa [#allocation3], 0
    %13 = vsyncpa [#allocation5], 0
    // Predicated region
    $region2: #{tpu_custom_call.1} parent=1 // pred_check
      _
    $region3: #{tpu_custom_call.1} parent=1 // pred_check_branch
      %15 = sbr.rel (0) target = $region5
    $region4: #{tpu_custom_call.1} parent=1 // pred_region
      _
    $region5: #{tpu_custom_call.1} parent=1 // pred_fallthru
      _
    // Predicated region
    $region6: #{tpu_custom_call.1} parent=1 // pred_check
      _
    $region7: #{tpu_custom_call.1} parent=1 // pred_check_branch
      %17 = sbr.rel (0) target = $region9
    $region8: #{tpu_custom_call.1} parent=1 // pred_region
      _
    $region9: #{tpu_custom_call.1} parent=1 // pred_fallthru
      _
    // Predicated region
    $region10: #{tpu_custom_call.1} parent=1 // pred_check
      _
    $region11: #{tpu_custom_call.1} parent=1 // pred_check_branch
      %19 = sbr.rel (0) target = $region13
    $region12: #{tpu_custom_call.1} parent=1 // pred_region
      _
    $region13: #{tpu_custom_call.1} parent=1 // pred_fallthru
      _
    // Predicated region
    $region14: #{tpu_custom_call.1} parent=1 // pred_check
      _
    $region15: #{tpu_custom_call.1} parent=1 // pred_check_branch
      %21 = sbr.rel (0) target = $region17
    $region16: #{tpu_custom_call.1} parent=1 // pred_region
      _
    $region17: #{tpu_custom_call.1} parent=1 // pred_fallthru
      _
    // Predicated region
    $region18: #{tpu_custom_call.1} parent=1 // pred_check
      _
    $region19: #{tpu_custom_call.1} parent=1 // pred_check_branch
      %23 = sbr.rel (0) target = $region21
    $region20: #{tpu_custom_call.1} parent=1 // pred_region
      _
    $region21: #{tpu_custom_call.1} parent=1 // pred_fallthru
      _
    %v24 = vld [vmem:[%s0] sm:$0x3f]
    %v25 = vld [vmem:[%s1] sm:$0xff]
    %v26 = vld [vmem:[%s1 + $0x8] sm:$0xff]
    %v27 = vld [vmem:[%s1 + $0x10] sm:$0xff]
    %v28 = vld [vmem:[%s1 + $0x18] sm:$0xff]
    %v29 = vld [vmem:[%s1 + $0x20] sm:$0xff]
    %v30 = vld [vmem:[%s1 + $0x28] sm:$0xff]
    %v31 = vld [vmem:[%s1 + $0x30] sm:$0xff]
    %v32 = vld [vmem:[%s1 + $0x38] sm:$0xff]
    %v33 = vld [vmem:[%s1 + $0x40] sm:$0xff]
    %v34 = vld [vmem:[%s1 + $0x48] sm:$0xff]
    %v35 = vld [vmem:[%s1 + $0x50] sm:$0xff]
    %v36 = vld [vmem:[%s1 + $0x58] sm:$0xff]
    %v37 = vld [vmem:[%s1 + $0x60] sm:$0xff]
    %v38 = vld [vmem:[%s1 + $0x68] sm:$0xff]
    %v39 = vld [vmem:[%s1 + $0x70] sm:$0xff]
    %v40 = vld [vmem:[%s1 + $0x78] sm:$0xff]
    %v41 = vld [vmem:[%s1 + $0x80] sm:$0xff]
    %v42 = vld [vmem:[%s1 + $0x88] sm:$0xff]
    %v43 = vld [vmem:[%s1 + $0x90] sm:$0xff]
    %v44 = vld [vmem:[%s1 + $0x98] sm:$0xff]
    %v45 = vld [vmem:[%s1 + $0xa0] sm:$0xff]
    %v46 = vld [vmem:[%s1 + $0xa8] sm:$0xff]
    %v47 = vld [vmem:[%s1 + $0xb0] sm:$0xff]
    %v48 = vld [vmem:[%s1 + $0xb8] sm:$0xff]
    %v49 = vld [vmem:[%s1 + $0xc0] sm:$0xff]
    %v50 = vld [vmem:[%s1 + $0xc8] sm:$0xff]
    %v51 = vld [vmem:[%s1 + $0xd0] sm:$0xff]
    %v52 = vld [vmem:[%s1 + $0xd8] sm:$0xff]
    %v53 = vld [vmem:[%s1 + $0xe0] sm:$0xff]
    %v54 = vld [vmem:[%s1 + $0xe8] sm:$0xff]
    %v55 = vld [vmem:[%s1 + $0xf0] sm:$0xff]
    %v56 = vld [vmem:[%s1 + $0xf8] sm:$0xff]
    %v57 = vld [vmem:[%s1 + $0x100] sm:$0xff]
    %v58 = vld [vmem:[%s1 + $0x108] sm:$0xff]
    %v59 = vld [vmem:[%s1 + $0x110] sm:$0xff]
    %v60 = vld [vmem:[%s1 + $0x118] sm:$0xff]
    %v61 = vld [vmem:[%s3] sm:$0xff]
    %v62 = vld [vmem:[%s3 + $0x8] sm:$0xff]
    %v63 = vld [vmem:[%s3 + $0x10] sm:$0xff]
    %v64 = vld [vmem:[%s3 + $0x18] sm:$0xff]
    %v65 = vld [vmem:[%s3 + $0x20] sm:$0xff]
    %v66 = vld [vmem:[%s3 + $0x28] sm:$0xff]
    %v67 = vld [vmem:[%s3 + $0x30] sm:$0xff]
    %v68 = vld [vmem:[%s3 + $0x38] sm:$0xff]
    %v69 = vld [vmem:[%s3 + $0x40] sm:$0xff]
    %v70 = vld [vmem:[%s3 + $0x48] sm:$0xff]
    %v71 = vld [vmem:[%s3 + $0x50] sm:$0xff]
    %v72 = vld [vmem:[%s3 + $0x58] sm:$0xff]
    %v73 = vld [vmem:[%s3 + $0x60] sm:$0xff]
    %v74 = vld [vmem:[%s3 + $0x68] sm:$0xff]
    %v75 = vld [vmem:[%s3 + $0x70] sm:$0xff]
    %v76 = vld [vmem:[%s3 + $0x78] sm:$0xff]
    %v77 = vld [vmem:[%s3 + $0x80] sm:$0xff]
    %v78 = vld [vmem:[%s3 + $0x88] sm:$0xff]
    %v79 = vld [vmem:[%s3 + $0x90] sm:$0xff]
    %v80 = vld [vmem:[%s3 + $0x98] sm:$0xff]
    %v81 = vld [vmem:[%s3 + $0xa0] sm:$0xff]
    %v82 = vld [vmem:[%s3 + $0xa8] sm:$0xff]
    %v83 = vld [vmem:[%s3 + $0xb0] sm:$0xff]
    %v84 = vld [vmem:[%s3 + $0xb8] sm:$0xff]
    %v85 = vld [vmem:[%s3 + $0xc0] sm:$0xff]
    %v86 = vld [vmem:[%s3 + $0xc8] sm:$0xff]
    %v87 = vld [vmem:[%s3 + $0xd0] sm:$0xff]
    %v88 = vld [vmem:[%s3 + $0xd8] sm:$0xff]
    %v89 = vld [vmem:[%s3 + $0xe0] sm:$0xff]
    %v90 = vld [vmem:[%s3 + $0xe8] sm:$0xff]
    %v91 = vld [vmem:[%s3 + $0xf0] sm:$0xff]
    %v92 = vld [vmem:[%s3 + $0xf8] sm:$0xff]
    %v93 = vld [vmem:[%s3 + $0x100] sm:$0xff]
    %v94 = vld [vmem:[%s3 + $0x108] sm:$0xff]
    %v95 = vld [vmem:[%s3 + $0x110] sm:$0xff]
    %v96 = vld [vmem:[%s3 + $0x118] sm:$0xff]
    %v97 = vld [vmem:[%s2] sm:$0x1]
    %v99 = vperm.slane %v97, 0
    %102 = vst [vmem:[#allocation1] ss:$4 sm:$0xff] %v24
    %v103 = vld.sshfl [vmem:[#allocation1] sm:$0xff pattern:$0x73625140]
    %v104 = vld.sshfl [vmem:[#allocation1 + $0x8] sm:$0xff pattern:$0x73625140]
    %v105 = vld.sshfl [vmem:[#allocation1 + $0x10] sm:$0xff pattern:$0x73625140]
    %vm108 = vcmask 261120
    %v109 = vsel %vm108, %v105, 0
    %111 = vmatpush.msra.mxu0 %v40
    %112 = vmatpush.msra.mxu0 %v39
    %113 = vmatpush.msra.mxu0 %v38
    %114 = vmatpush.msra.mxu0 %v37
    %115 = vmatpush.msra.mxu0 %v36
    %116 = vmatpush.msra.mxu0 %v35
    %117 = vmatpush.msra.mxu0 %v34
    %118 = vmatpush.msra.mxu0 %v33
    %119 = vmatpush.msra.mxu0 %v32
    %120 = vmatpush.msra.mxu0 %v31
    %121 = vmatpush.msra.mxu0 %v30
    %122 = vmatpush.msra.mxu0 %v29
    %123 = vmatpush.msra.mxu0 %v28
    %124 = vmatpush.msra.mxu0 %v27
    %125 = vmatpush.msra.mxu0 %v26
    %126 = vmatpush.msra.mxu0 %v25
    %127 = vmatmul.f32.gmra.mxu0 %v103
    %v128 = vpop.f32.mrf.mxu0
    %v129 = vadd.f32 %v99, %v128
    %130 = vdwg.mxu0
    %131 = vmatpush.msra.mxu0 %v56
    %132 = vmatpush.msra.mxu0 %v55
    %133 = vmatpush.msra.mxu0 %v54
    %134 = vmatpush.msra.mxu0 %v53
    %135 = vmatpush.msra.mxu0 %v52
    %136 = vmatpush.msra.mxu0 %v51
    %137 = vmatpush.msra.mxu0 %v50
    %138 = vmatpush.msra.mxu0 %v49
    %139 = vmatpush.msra.mxu0 %v48
    %140 = vmatpush.msra.mxu0 %v47
    %141 = vmatpush.msra.mxu0 %v46
    %142 = vmatpush.msra.mxu0 %v45
    %143 = vmatpush.msra.mxu0 %v44
    %144 = vmatpush.msra.mxu0 %v43
    %145 = vmatpush.msra.mxu0 %v42
    %146 = vmatpush.msra.mxu0 %v41
    %147 = vmatmul.f32.gmra.mxu0 %v104
    %v148 = vpop.f32.mrf.mxu0
    %v149 = vadd.f32 %v129, %v148
    %150 = vdwg.mxu0
    %151 = vmatpush.msra.mxu0 0.0
    %152 = vmatpush.msra.mxu0 0.0
    %153 = vmatpush.msra.mxu0 0.0
    %154 = vmatpush.msra.mxu0 0.0
    %155 = vmatpush.msra.mxu0 0.0
    %156 = vmatpush.msra.mxu0 0.0
    %157 = vmatpush.msra.mxu0 0.0
    %158 = vmatpush.msra.mxu0 0.0
    %159 = vmatpush.msra.mxu0 0.0
    %160 = vmatpush.msra.mxu0 0.0
    %161 = vmatpush.msra.mxu0 0.0
    %162 = vmatpush.msra.mxu0 0.0
    %163 = vmatpush.msra.mxu0 %v60
    %164 = vmatpush.msra.mxu0 %v59
    %165 = vmatpush.msra.mxu0 %v58
    %166 = vmatpush.msra.mxu0 %v57
    %167 = vmatmul.f32.gmra.mxu0 %v109
    %v168 = vpop.f32.mrf.mxu0
    %v169 = vadd.f32 %v149, %v168
    %170 = vdwg.mxu0
    %vm171 = vcmask 582656
    %172 = vst.msk [vmem:[#allocation2] sm:$0x3] %vm171, %v169
    %v173 = vld [vmem:[%s4] sm:$0x1]
    %v175 = vperm.slane %v173, 0
    %177 = vst [vmem:[#allocation1] ss:$4 sm:$0xff] %v24
    %v178 = vld.sshfl [vmem:[#allocation1] sm:$0xff pattern:$0x73625140]
    %v179 = vld.sshfl [vmem:[#allocation1 + $0x8] sm:$0xff pattern:$0x73625140]
    %v180 = vld.sshfl [vmem:[#allocation1 + $0x10] sm:$0xff pattern:$0x73625140]
    %v183 = vsel %vm108, %v180, 0
    %185 = vmatpush.msra.mxu0 %v76
    %186 = vmatpush.msra.mxu0 %v75
    %187 = vmatpush.msra.mxu0 %v74
    %188 = vmatpush.msra.mxu0 %v73
    %189 = vmatpush.msra.mxu0 %v72
    %190 = vmatpush.msra.mxu0 %v71
    %191 = vmatpush.msra.mxu0 %v70
    %192 = vmatpush.msra.mxu0 %v69
    %193 = vmatpush.msra.mxu0 %v68
    %194 = vmatpush.msra.mxu0 %v67
    %195 = vmatpush.msra.mxu0 %v66
    %196 = vmatpush.msra.mxu0 %v65
    %197 = vmatpush.msra.mxu0 %v64
    %198 = vmatpush.msra.mxu0 %v63
    %199 = vmatpush.msra.mxu0 %v62
    %200 = vmatpush.msra.mxu0 %v61
    %201 = vmatmul.f32.gmra.mxu0 %v178
    %v202 = vpop.f32.mrf.mxu0
    %v203 = vadd.f32 %v175, %v202
    %204 = vdwg.mxu0
    %205 = vmatpush.msra.mxu0 %v92
    %206 = vmatpush.msra.mxu0 %v91
    %207 = vmatpush.msra.mxu0 %v90
    %208 = vmatpush.msra.mxu0 %v89
    %209 = vmatpush.msra.mxu0 %v88
    %210 = vmatpush.msra.mxu0 %v87
    %211 = vmatpush.msra.mxu0 %v86
    %212 = vmatpush.msra.mxu0 %v85
    %213 = vmatpush.msra.mxu0 %v84
    %214 = vmatpush.msra.mxu0 %v83
    %215 = vmatpush.msra.mxu0 %v82
    %216 = vmatpush.msra.mxu0 %v81
    %217 = vmatpush.msra.mxu0 %v80
    %218 = vmatpush.msra.mxu0 %v79
    %219 = vmatpush.msra.mxu0 %v78
    %220 = vmatpush.msra.mxu0 %v77
    %221 = vmatmul.f32.gmra.mxu0 %v179
    %v222 = vpop.f32.mrf.mxu0
    %v223 = vadd.f32 %v203, %v222
    %224 = vdwg.mxu0
    %225 = vmatpush.msra.mxu0 0.0
    %226 = vmatpush.msra.mxu0 0.0
    %227 = vmatpush.msra.mxu0 0.0
    %228 = vmatpush.msra.mxu0 0.0
    %229 = vmatpush.msra.mxu0 0.0
    %230 = vmatpush.msra.mxu0 0.0
    %231 = vmatpush.msra.mxu0 0.0
    %232 = vmatpush.msra.mxu0 0.0
    %233 = vmatpush.msra.mxu0 0.0
    %234 = vmatpush.msra.mxu0 0.0
    %235 = vmatpush.msra.mxu0 0.0
    %236 = vmatpush.msra.mxu0 0.0
    %237 = vmatpush.msra.mxu0 %v96
    %238 = vmatpush.msra.mxu0 %v95
    %239 = vmatpush.msra.mxu0 %v94
    %240 = vmatpush.msra.mxu0 %v93
    %241 = vmatmul.f32.gmra.mxu0 %v183
    %v242 = vpop.f32.mrf.mxu0
    %v243 = vadd.f32 %v223, %v242
    %244 = vdwg.mxu0
    %vm245 = vcmask 25600
    %246 = vst.msk [vmem:[#allocation4] sm:$0x3] %vm245, %v243
    // Predicated region
    $region22: #{tpu_custom_call.1} parent=1 // pred_check
      _
    $region23: #{tpu_custom_call.1} parent=1 // pred_check_branch
      %248 = sbr.rel (0) target = $region25
    $region24: #{tpu_custom_call.1} parent=1 // pred_region
      %250 = vsyncadd [#allocation3], 0
      %s252 = sshll.u32 [#allocation2], 4
      %s253 = int_to_ptr.vmem [resolvable:$true] %s252
      %s254 = sshll.u32 %s5, 4
      %s255 = int_to_ptr.hbm [resolvable:$true] %s254
      %257 = dma.vmem_to_hbm [thread:$0]  %s253, 32, %s255, [#allocation3]
    $region25: #{tpu_custom_call.1} parent=1 // pred_fallthru
      _
    // Predicated region
    $region26: #{tpu_custom_call.1} parent=1 // pred_check
      _
    $region27: #{tpu_custom_call.1} parent=1 // pred_check_branch
      %259 = sbr.rel (0) target = $region29
    $region28: #{tpu_custom_call.1} parent=1 // pred_region
      %261 = vsyncadd [#allocation5], 0
      %s263 = sshll.u32 [#allocation4], 4
      %s264 = int_to_ptr.vmem [resolvable:$true] %s263
      %s265 = sshll.u32 %s6, 4
      %s266 = int_to_ptr.hbm [resolvable:$true] %s265
      %268 = dma.vmem_to_hbm [thread:$0]  %s264, 32, %s266, [#allocation5]
    $region29: #{tpu_custom_call.1} parent=1 // pred_fallthru
      _
    // Predicated region
    $region30: #{tpu_custom_call.1} parent=1 // pred_check
      _
    $region31: #{tpu_custom_call.1} parent=1 // pred_check_branch
      %270 = sbr.rel (0) target = $region33
    $region32: #{tpu_custom_call.1} parent=1 // pred_region
      %272 = dma.done [#allocation3], 32
    $region33: #{tpu_custom_call.1} parent=1 // pred_fallthru
      _
    // Predicated region
    $region34: #{tpu_custom_call.1} parent=1 // pred_check
      _
    $region35: #{tpu_custom_call.1} parent=1 // pred_check_branch
      %274 = sbr.rel (0) target = $region37
    $region36: #{tpu_custom_call.1} parent=1 // pred_region
      %276 = dma.done [#allocation5], 32
    $region37: #{tpu_custom_call.1} parent=1 // pred_fallthru
      _
    %277 = vsyncpa [#allocation3], 1
    %278 = vsyncpa [#allocation5], 1

</llo_original>
